<compile_context>
chip_gen: v6e
topology: v6e:2x2x1
jax: 0.10.0
libtpu: 0.0.40
codegen_flags: <defaults>
</compile_context>

<pallas_src>
import jax
import jax.numpy as jnp
from jax.experimental import pallas as pl
from jax.experimental.pallas import tpu as pltpu


def cchead_kernel(rep_ref, base_w_ref, base_b_ref, cls_wh_t_ref, cls_b_t_ref,
                  cls_wp_ref, out_ref, prob_ref):
    # rep_ref:      (TILE_B, rep_dim)      VMEM (pipelined per grid step)
    # base_w_ref:   (rep_dim, hidden)      VMEM (resident, block (0,0))
    # base_b_ref:   (1, hidden)            VMEM
    # cls_wh_t_ref: (n_labels, hidden)     VMEM
    # cls_b_t_ref:  (n_labels, 1)          VMEM
    # cls_wp_ref:   (n_labels, n_labels)   SMEM (scalar chain weights, strict lower tri)
    # out_ref:      (n_labels, TILE_B)     VMEM output, batch on lanes (lane-dense)
    # prob_ref:     (n_labels, TILE_B)     VMEM scratch for sigmoid rows

    # Base MLP: Linear + ReLU (MXU dot #1, natural MK x KN layout).
    h0 = jnp.dot(rep_ref[...], base_w_ref[...],
                 preferred_element_type=jnp.float32)
    h0 = jnp.maximum(h0 + base_b_ref[...].astype(jnp.float32), 0.0)   # (TILE_B, hidden)

    # Hidden-feature part of all classifiers at once, produced already
    # transposed (batch on lanes) via an NT dot — same pattern as q @ k^T,
    # so the h0 "transpose" is folded into the MXU operand load.
    base_logits_t = jax.lax.dot_general(
        cls_wh_t_ref[...].astype(jnp.float32), h0,
        dimension_numbers=(((1,), (1,)), ((), ())),
        preferred_element_type=jnp.float32) + cls_b_t_ref[...]        # (n_labels, TILE_B)
    out_ref[...] = base_logits_t.astype(out_ref.dtype)

    n_labels = out_ref.shape[0]

    # Sequential label chain: per-row VPU scalar-broadcast FMAs + one EUP
    # sigmoid per label.  Rows are streamed straight into out_ref / prob_ref,
    # so live values stay O(one row) no matter how big tile_b is.  No MXU,
    # no concatenate.
    for i in range(n_labels):
        acc = out_ref[i:i + 1, :]                                     # (1, TILE_B)
        for j in range(i):
            acc = acc + prob_ref[j:j + 1, :] * cls_wp_ref[j, i]       # SMEM scalar bcast
        if i > 0:
            out_ref[i:i + 1, :] = acc
        if i + 1 < n_labels:
            prob_ref[i:i + 1, :] = jax.nn.sigmoid(acc)


def cchead_pallas(rep, base_w, base_b, cls_wh, cls_wp, cls_b, *,
                  tile_b=16384, transpose_out=True, compute_dtype=None,
                  vmem_limit_bytes=32 * 1024 * 1024):
    """rep: (B, rep_dim); weights input-major: base_w (rep_dim, hidden),
    base_b (1, hidden), cls_wh (hidden, n_labels), cls_wp (n_labels, n_labels)
    (only the strict lower triangle, rows j < i of column i, is used),
    cls_b (1, n_labels).

    Returns logits (B, n_labels) f32 if transpose_out else (n_labels, B)
    (lane-dense layout — use this from fused consumers to skip an extra HBM
    pass over the logits)."""
    B, rep_dim = rep.shape
    hidden, n_labels = cls_wh.shape

    if compute_dtype is not None:
        # Ideally the caller already provides rep in this dtype (it is the
        # dominant HBM read stream); the dots keep f32 accumulation and the
        # sigmoid chain stays f32 regardless.
        rep = rep.astype(compute_dtype)
        base_w = base_w.astype(compute_dtype)

    # Lane-dense batch tile: multiple of 128, big enough to amortise the fixed
    # per-grid-step cost, clamped so (a) tiny batches don't over-pad and
    # (b) the grid keeps >= 2 steps when B > 128 (v7x: 2 TensorCores).
    tile_b = max(128, (int(tile_b) // 128) * 128)
    two_step_cap = max(128, pl.cdiv(pl.cdiv(B, 2), 128) * 128)
    tile_b = min(tile_b, two_step_cap)
    b_pad = pl.cdiv(B, tile_b) * tile_b
    if b_pad != B:
        rep = jnp.pad(rep, ((0, b_pad - B), (0, 0)))

    base_b = base_b.reshape(1, hidden).astype(jnp.float32)
    cls_wh_t = cls_wh.T.astype(jnp.float32)              # (n_labels, hidden)
    cls_b_t = cls_b.reshape(n_labels, 1).astype(jnp.float32)
    cls_wp = cls_wp.astype(jnp.float32)

    grid = (b_pad // tile_b,)
    out_t = pl.pallas_call(
        cchead_kernel,
        out_shape=jax.ShapeDtypeStruct((n_labels, b_pad), jnp.float32),
        grid=grid,
        in_specs=[
            pl.BlockSpec((tile_b, rep_dim), lambda i: (i, 0)),     # rep tile (pipelined)
            pl.BlockSpec((rep_dim, hidden), lambda i: (0, 0)),     # base_w (resident)
            pl.BlockSpec((1, hidden), lambda i: (0, 0)),           # base_b
            pl.BlockSpec((n_labels, hidden), lambda i: (0, 0)),    # cls_wh_t
            pl.BlockSpec((n_labels, 1), lambda i: (0, 0)),         # cls_b_t
            pl.BlockSpec(memory_space=pltpu.MemorySpace.SMEM),     # cls_wp (scalars)
        ],
        out_specs=pl.BlockSpec((n_labels, tile_b), lambda i: (0, i)),
        scratch_shapes=[pltpu.VMEM((n_labels, tile_b), jnp.float32)],
        compiler_params=pltpu.CompilerParams(
            dimension_semantics=("parallel",),
            vmem_limit_bytes=vmem_limit_bytes,
        ),
    )(rep, base_w, base_b, cls_wh_t, cls_b_t, cls_wp)

    out_t = out_t[:, :B]                      # (n_labels, B), lane-dense
    if transpose_out:
        # Matches the PyTorch module layout; costs one extra HBM pass over the
        # logits.  Fused consumers should pass transpose_out=False instead.
        return out_t.T                        # (B, n_labels)
    return out_t


def cchead_reference(rep, base_w, base_b, cls_w_list, cls_b_list):
    """Pure-JAX reference matching the PyTorch forward exactly."""
    h0 = jnp.maximum(rep @ base_w + base_b, 0.0)
    logits, probs = [], []
    for i, (w_i, b_i) in enumerate(zip(cls_w_list, cls_b_list)):
        h = h0 if i == 0 else jnp.concatenate([h0] + probs, axis=1)
        logit = h @ w_i[:, None] + b_i          # (B, 1)
        logits.append(logit)
        probs.append(jax.nn.sigmoid(logit))
    return jnp.concatenate(logits, axis=1)


if __name__ == "__main__":
    rep_dim, n_labels, hidden = 16, 8, 32

    key = jax.random.PRNGKey(0)
    k_rep, k_bw, k_bb, k_cw, k_cb, k_rep2 = jax.random.split(key, 6)

    # base = Linear(rep_dim, hidden) + ReLU (weights stored input-major)
    base_w = jax.random.normal(k_bw, (rep_dim, hidden), dtype=jnp.float32) * 0.2
    base_b = jax.random.normal(k_bb, (1, hidden), dtype=jnp.float32) * 0.1

    # cls_layers[i] = Linear(hidden + i, 1); pack into dense tensors.
    cls_w_list, cls_b_list = [], []
    cw_keys = jax.random.split(k_cw, n_labels)
    cb_keys = jax.random.split(k_cb, n_labels)
    for i in range(n_labels):
        cls_w_list.append(
            jax.random.normal(cw_keys[i], (hidden + i,), dtype=jnp.float32) * 0.2)
        cls_b_list.append(
            jax.random.normal(cb_keys[i], (1,), dtype=jnp.float32) * 0.1)

    cls_wh = jnp.zeros((hidden, n_labels), jnp.float32)     # hidden-feature weights
    cls_wp = jnp.zeros((n_labels, n_labels), jnp.float32)   # prob-feature weights (j < i)
    cls_b = jnp.zeros((1, n_labels), jnp.float32)
    for i in range(n_labels):
        cls_wh = cls_wh.at[:, i].set(cls_w_list[i][:hidden])
        if i > 0:
            cls_wp = cls_wp.at[:i, i].set(cls_w_list[i][hidden:])
        cls_b = cls_b.at[0, i].set(cls_b_list[i][0])

    # --- test 1: tiny batch, single padded tile, default tile clamp ---
    B1 = 2
    rep1 = jax.random.normal(k_rep, (B1, rep_dim), dtype=jnp.float32)
    out1 = cchead_pallas(rep1, base_w, base_b, cls_wh, cls_wp, cls_b)
    jax.block_until_ready(out1)
    ref1 = cchead_reference(rep1, base_w, base_b, cls_w_list, cls_b_list)
    assert out1.shape == (B1, n_labels), out1.shape
    assert jnp.allclose(out1, ref1, atol=1e-4, rtol=1e-4), (out1, ref1)

    # --- test 2: batch needing padding + multi-step pipelined grid ---
    B2 = 300
    rep2 = jax.random.normal(k_rep2, (B2, rep_dim), dtype=jnp.float32)
    out2 = cchead_pallas(rep2, base_w, base_b, cls_wh, cls_wp, cls_b, tile_b=128)
    jax.block_until_ready(out2)
    ref2 = cchead_reference(rep2, base_w, base_b, cls_w_list, cls_b_list)
    assert out2.shape == (B2, n_labels), out2.shape
    assert jnp.allclose(out2, ref2, atol=1e-4, rtol=1e-4), (out2, ref2)

    # --- test 3: lane-dense (n_labels, B) output (no wrapper transpose pass) ---
    out3 = cchead_pallas(rep2, base_w, base_b, cls_wh, cls_wp, cls_b,
                         transpose_out=False)
    jax.block_until_ready(out3)
    assert out3.shape == (n_labels, B2), out3.shape
    assert jnp.allclose(out3.T, ref2, atol=1e-4, rtol=1e-4)

    # --- test 4: bf16 rep/base_w (halves the dominant HBM read), chain stays f32 ---
    out4 = cchead_pallas(rep2, base_w, base_b, cls_wh, cls_wp, cls_b,
                         compute_dtype=jnp.bfloat16)
    jax.block_until_ready(out4)
    assert out4.shape == (B2, n_labels), out4.shape
    assert jnp.allclose(out4, ref2, atol=5e-2, rtol=5e-2)

    print("KERNEL_OK")
</pallas_src>

<mosaic_0001>
module attributes {stable_mosaic.version = 11 : i64} {
  func.func @cchead_kernel(%arg0: i32, %arg1: memref<128x16xf32, #tpu.memory_space<vmem>>, %arg2: memref<16x32xf32, #tpu.memory_space<vmem>>, %arg3: memref<1x32xf32, #tpu.memory_space<vmem>>, %arg4: memref<8x32xf32, #tpu.memory_space<vmem>>, %arg5: memref<8x1xf32, #tpu.memory_space<vmem>>, %arg6: memref<8x8xf32, #tpu.memory_space<smem>>, %arg7: memref<8x128xf32, #tpu.memory_space<vmem>>, %arg8: memref<8x128xf32, #tpu.memory_space<vmem>>) attributes {dimension_semantics = [#tpu.dimension_semantics<parallel>], iteration_bounds = array<i64: 1>, scalar_prefetch = 0 : i64, scratch_operands = 1 : i64, tpu.core_type = #tpu.core_type<tc>, window_params = [{transform_indices = @transform_0, window_bounds = array<i64: 128, 16>}, {pipeline_mode = #tpu.pipeline_mode<synchronous>, transform_indices = @transform_1, window_bounds = array<i64: 16, 32>}, {pipeline_mode = #tpu.pipeline_mode<synchronous>, transform_indices = @transform_2, window_bounds = array<i64: 1, 32>}, {pipeline_mode = #tpu.pipeline_mode<synchronous>, transform_indices = @transform_3, window_bounds = array<i64: 8, 32>}, {pipeline_mode = #tpu.pipeline_mode<synchronous>, transform_indices = @transform_4, window_bounds = array<i64: 8, 1>}, {transform_indices = @transform_5, window_bounds = array<i64: 8, 8>}, {transform_indices = @transform_6, window_bounds = array<i64: 8, 128>}]} {
    %c0 = arith.constant 0 : index
    %c0_0 = arith.constant 0 : index
    %0 = vector.load %arg1[%c0, %c0_0] : memref<128x16xf32, #tpu.memory_space<vmem>>, vector<128x16xf32>
    %c0_1 = arith.constant 0 : index
    %c0_2 = arith.constant 0 : index
    %1 = vector.load %arg2[%c0_1, %c0_2] : memref<16x32xf32, #tpu.memory_space<vmem>>, vector<16x32xf32>
    %cst = arith.constant dense<0.000000e+00> : vector<128x32xf32>
    %2 = tpu.matmul %0, %1, %cst {dimension_numbers = #tpu.dot_dimension_numbers<[1], [0], [0], [1], [0, 0, 1, 1], [], []>} : vector<128x16xf32>, vector<16x32xf32>, vector<128x32xf32> -> vector<128x32xf32>
    %c0_3 = arith.constant 0 : index
    %c0_4 = arith.constant 0 : index
    %3 = vector.load %arg3[%c0_3, %c0_4] : memref<1x32xf32, #tpu.memory_space<vmem>>, vector<1x32xf32>
    %4 = vector.broadcast %3 : vector<1x32xf32> to vector<128x32xf32>
    %5 = arith.addf %2, %4 : vector<128x32xf32>
    %cst_5 = arith.constant 0.000000e+00 : f32
    %6 = vector.broadcast %cst_5 : f32 to vector<128x32xf32>
    %7 = arith.maximumf %5, %6 : vector<128x32xf32>
    %c0_6 = arith.constant 0 : index
    %c0_7 = arith.constant 0 : index
    %8 = vector.load %arg4[%c0_6, %c0_7] : memref<8x32xf32, #tpu.memory_space<vmem>>, vector<8x32xf32>
    %cst_8 = arith.constant dense<0.000000e+00> : vector<8x128xf32>
    %9 = tpu.matmul %8, %7, %cst_8 {dimension_numbers = #tpu.dot_dimension_numbers<[1], [1], [0], [0], [0, 0, 1, 0], [], []>} : vector<8x32xf32>, vector<128x32xf32>, vector<8x128xf32> -> vector<8x128xf32>
    %c0_9 = arith.constant 0 : index
    %c0_10 = arith.constant 0 : index
    %10 = vector.load %arg5[%c0_9, %c0_10] : memref<8x1xf32, #tpu.memory_space<vmem>>, vector<8x1xf32>
    %11 = vector.broadcast %10 : vector<8x1xf32> to vector<8x128xf32>
    %12 = arith.addf %9, %11 : vector<8x128xf32>
    %c0_11 = arith.constant 0 : index
    %c0_12 = arith.constant 0 : index
    %13 = vector.load %arg7[%c0_11, %c0_12] : memref<8x128xf32, #tpu.memory_space<vmem>>, vector<8x128xf32>
    tpu.vector_store %arg7[%c0_11, %c0_12], %12 {strides = array<i32>} : memref<8x128xf32, #tpu.memory_space<vmem>>, vector<8x128xf32>,
    %c0_13 = arith.constant 0 : index
    %c0_14 = arith.constant 0 : index
    %14 = vector.load %arg7[%c0_13, %c0_14] : memref<8x128xf32, #tpu.memory_space<vmem>>, vector<1x128xf32>
    %15 = arith.negf %14 : vector<1x128xf32>
    %16 = math.exp %15 : vector<1x128xf32>
    %cst_15 = arith.constant 1.000000e+00 : f32
    %17 = vector.broadcast %cst_15 : f32 to vector<1x128xf32>
    %18 = arith.addf %17, %16 : vector<1x128xf32>
    %19 = arith.divf %17, %18 : vector<1x128xf32>
    %c0_16 = arith.constant 0 : index
    %c0_17 = arith.constant 0 : index
    %20 = vector.load %arg8[%c0_16, %c0_17] : memref<8x128xf32, #tpu.memory_space<vmem>>, vector<1x128xf32>
    tpu.vector_store %arg8[%c0_16, %c0_17], %19 {strides = array<i32>} : memref<8x128xf32, #tpu.memory_space<vmem>>, vector<1x128xf32>,
    %c1 = arith.constant 1 : index
    %c0_18 = arith.constant 0 : index
    %21 = vector.load %arg7[%c1, %c0_18] : memref<8x128xf32, #tpu.memory_space<vmem>>, vector<1x128xf32>
    %c0_19 = arith.constant 0 : index
    %c0_20 = arith.constant 0 : index
    %22 = vector.load %arg8[%c0_19, %c0_20] : memref<8x128xf32, #tpu.memory_space<vmem>>, vector<1x128xf32>
    %c0_21 = arith.constant 0 : index
    %c1_22 = arith.constant 1 : index
    %23 = memref.load %arg6[%c0_21, %c1_22] : memref<8x8xf32, #tpu.memory_space<smem>>
    %24 = vector.broadcast %23 : f32 to vector<1x128xf32>
    %25 = arith.mulf %22, %24 : vector<1x128xf32>
    %26 = arith.addf %21, %25 : vector<1x128xf32>
    %c1_23 = arith.constant 1 : index
    %c0_24 = arith.constant 0 : index
    %27 = vector.load %arg7[%c1_23, %c0_24] : memref<8x128xf32, #tpu.memory_space<vmem>>, vector<1x128xf32>
    tpu.vector_store %arg7[%c1_23, %c0_24], %26 {strides = array<i32>} : memref<8x128xf32, #tpu.memory_space<vmem>>, vector<1x128xf32>,
    %28 = arith.negf %26 : vector<1x128xf32>
    %29 = math.exp %28 : vector<1x128xf32>
    %cst_25 = arith.constant 1.000000e+00 : f32
    %30 = vector.broadcast %cst_25 : f32 to vector<1x128xf32>
    %31 = arith.addf %30, %29 : vector<1x128xf32>
    %32 = arith.divf %30, %31 : vector<1x128xf32>
    %c1_26 = arith.constant 1 : index
    %c0_27 = arith.constant 0 : index
    %33 = vector.load %arg8[%c1_26, %c0_27] : memref<8x128xf32, #tpu.memory_space<vmem>>, vector<1x128xf32>
    tpu.vector_store %arg8[%c1_26, %c0_27], %32 {strides = array<i32>} : memref<8x128xf32, #tpu.memory_space<vmem>>, vector<1x128xf32>,
    %c2 = arith.constant 2 : index
    %c0_28 = arith.constant 0 : index
    %34 = vector.load %arg7[%c2, %c0_28] : memref<8x128xf32, #tpu.memory_space<vmem>>, vector<1x128xf32>
    %c0_29 = arith.constant 0 : index
    %c0_30 = arith.constant 0 : index
    %35 = vector.load %arg8[%c0_29, %c0_30] : memref<8x128xf32, #tpu.memory_space<vmem>>, vector<1x128xf32>
    %c0_31 = arith.constant 0 : index
    %c2_32 = arith.constant 2 : index
    %36 = memref.load %arg6[%c0_31, %c2_32] : memref<8x8xf32, #tpu.memory_space<smem>>
    %37 = vector.broadcast %36 : f32 to vector<1x128xf32>
    %38 = arith.mulf %35, %37 : vector<1x128xf32>
    %39 = arith.addf %34, %38 : vector<1x128xf32>
    %c1_33 = arith.constant 1 : index
    %c0_34 = arith.constant 0 : index
    %40 = vector.load %arg8[%c1_33, %c0_34] : memref<8x128xf32, #tpu.memory_space<vmem>>, vector<1x128xf32>
    %c1_35 = arith.constant 1 : index
    %c2_36 = arith.constant 2 : index
    %41 = memref.load %arg6[%c1_35, %c2_36] : memref<8x8xf32, #tpu.memory_space<smem>>
    %42 = vector.broadcast %41 : f32 to vector<1x128xf32>
    %43 = arith.mulf %40, %42 : vector<1x128xf32>
    %44 = arith.addf %39, %43 : vector<1x128xf32>
    %c2_37 = arith.constant 2 : index
    %c0_38 = arith.constant 0 : index
    %45 = vector.load %arg7[%c2_37, %c0_38] : memref<8x128xf32, #tpu.memory_space<vmem>>, vector<1x128xf32>
    tpu.vector_store %arg7[%c2_37, %c0_38], %44 {strides = array<i32>} : memref<8x128xf32, #tpu.memory_space<vmem>>, vector<1x128xf32>,
    %46 = arith.negf %44 : vector<1x128xf32>
    %47 = math.exp %46 : vector<1x128xf32>
    %cst_39 = arith.constant 1.000000e+00 : f32
    %48 = vector.broadcast %cst_39 : f32 to vector<1x128xf32>
    %49 = arith.addf %48, %47 : vector<1x128xf32>
    %50 = arith.divf %48, %49 : vector<1x128xf32>
    %c2_40 = arith.constant 2 : index
    %c0_41 = arith.constant 0 : index
    %51 = vector.load %arg8[%c2_40, %c0_41] : memref<8x128xf32, #tpu.memory_space<vmem>>, vector<1x128xf32>
    tpu.vector_store %arg8[%c2_40, %c0_41], %50 {strides = array<i32>} : memref<8x128xf32, #tpu.memory_space<vmem>>, vector<1x128xf32>,
    %c3 = arith.constant 3 : index
    %c0_42 = arith.constant 0 : index
    %52 = vector.load %arg7[%c3, %c0_42] : memref<8x128xf32, #tpu.memory_space<vmem>>, vector<1x128xf32>
    %c0_43 = arith.constant 0 : index
    %c0_44 = arith.constant 0 : index
    %53 = vector.load %arg8[%c0_43, %c0_44] : memref<8x128xf32, #tpu.memory_space<vmem>>, vector<1x128xf32>
    %c0_45 = arith.constant 0 : index
    %c3_46 = arith.constant 3 : index
    %54 = memref.load %arg6[%c0_45, %c3_46] : memref<8x8xf32, #tpu.memory_space<smem>>
    %55 = vector.broadcast %54 : f32 to vector<1x128xf32>
    %56 = arith.mulf %53, %55 : vector<1x128xf32>
    %57 = arith.addf %52, %56 : vector<1x128xf32>
    %c1_47 = arith.constant 1 : index
    %c0_48 = arith.constant 0 : index
    %58 = vector.load %arg8[%c1_47, %c0_48] : memref<8x128xf32, #tpu.memory_space<vmem>>, vector<1x128xf32>
    %c1_49 = arith.constant 1 : index
    %c3_50 = arith.constant 3 : index
    %59 = memref.load %arg6[%c1_49, %c3_50] : memref<8x8xf32, #tpu.memory_space<smem>>
    %60 = vector.broadcast %59 : f32 to vector<1x128xf32>
    %61 = arith.mulf %58, %60 : vector<1x128xf32>
    %62 = arith.addf %57, %61 : vector<1x128xf32>
    %c2_51 = arith.constant 2 : index
    %c0_52 = arith.constant 0 : index
    %63 = vector.load %arg8[%c2_51, %c0_52] : memref<8x128xf32, #tpu.memory_space<vmem>>, vector<1x128xf32>
    %c2_53 = arith.constant 2 : index
    %c3_54 = arith.constant 3 : index
    %64 = memref.load %arg6[%c2_53, %c3_54] : memref<8x8xf32, #tpu.memory_space<smem>>
    %65 = vector.broadcast %64 : f32 to vector<1x128xf32>
    %66 = arith.mulf %63, %65 : vector<1x128xf32>
    %67 = arith.addf %62, %66 : vector<1x128xf32>
    %c3_55 = arith.constant 3 : index
    %c0_56 = arith.constant 0 : index
    %68 = vector.load %arg7[%c3_55, %c0_56] : memref<8x128xf32, #tpu.memory_space<vmem>>, vector<1x128xf32>
    tpu.vector_store %arg7[%c3_55, %c0_56], %67 {strides = array<i32>} : memref<8x128xf32, #tpu.memory_space<vmem>>, vector<1x128xf32>,
    %69 = arith.negf %67 : vector<1x128xf32>
    %70 = math.exp %69 : vector<1x128xf32>
    %cst_57 = arith.constant 1.000000e+00 : f32
    %71 = vector.broadcast %cst_57 : f32 to vector<1x128xf32>
    %72 = arith.addf %71, %70 : vector<1x128xf32>
    %73 = arith.divf %71, %72 : vector<1x128xf32>
    %c3_58 = arith.constant 3 : index
    %c0_59 = arith.constant 0 : index
    %74 = vector.load %arg8[%c3_58, %c0_59] : memref<8x128xf32, #tpu.memory_space<vmem>>, vector<1x128xf32>
    tpu.vector_store %arg8[%c3_58, %c0_59], %73 {strides = array<i32>} : memref<8x128xf32, #tpu.memory_space<vmem>>, vector<1x128xf32>,
    %c4 = arith.constant 4 : index
    %c0_60 = arith.constant 0 : index
    %75 = vector.load %arg7[%c4, %c0_60] : memref<8x128xf32, #tpu.memory_space<vmem>>, vector<1x128xf32>
    %c0_61 = arith.constant 0 : index
    %c0_62 = arith.constant 0 : index
    %76 = vector.load %arg8[%c0_61, %c0_62] : memref<8x128xf32, #tpu.memory_space<vmem>>, vector<1x128xf32>
    %c0_63 = arith.constant 0 : index
    %c4_64 = arith.constant 4 : index
    %77 = memref.load %arg6[%c0_63, %c4_64] : memref<8x8xf32, #tpu.memory_space<smem>>
    %78 = vector.broadcast %77 : f32 to vector<1x128xf32>
    %79 = arith.mulf %76, %78 : vector<1x128xf32>
    %80 = arith.addf %75, %79 : vector<1x128xf32>
    %c1_65 = arith.constant 1 : index
    %c0_66 = arith.constant 0 : index
    %81 = vector.load %arg8[%c1_65, %c0_66] : memref<8x128xf32, #tpu.memory_space<vmem>>, vector<1x128xf32>
    %c1_67 = arith.constant 1 : index
    %c4_68 = arith.constant 4 : index
    %82 = memref.load %arg6[%c1_67, %c4_68] : memref<8x8xf32, #tpu.memory_space<smem>>
    %83 = vector.broadcast %82 : f32 to vector<1x128xf32>
    %84 = arith.mulf %81, %83 : vector<1x128xf32>
    %85 = arith.addf %80, %84 : vector<1x128xf32>
    %c2_69 = arith.constant 2 : index
    %c0_70 = arith.constant 0 : index
    %86 = vector.load %arg8[%c2_69, %c0_70] : memref<8x128xf32, #tpu.memory_space<vmem>>, vector<1x128xf32>
    %c2_71 = arith.constant 2 : index
    %c4_72 = arith.constant 4 : index
    %87 = memref.load %arg6[%c2_71, %c4_72] : memref<8x8xf32, #tpu.memory_space<smem>>
    %88 = vector.broadcast %87 : f32 to vector<1x128xf32>
    %89 = arith.mulf %86, %88 : vector<1x128xf32>
    %90 = arith.addf %85, %89 : vector<1x128xf32>
    %c3_73 = arith.constant 3 : index
    %c0_74 = arith.constant 0 : index
    %91 = vector.load %arg8[%c3_73, %c0_74] : memref<8x128xf32, #tpu.memory_space<vmem>>, vector<1x128xf32>
    %c3_75 = arith.constant 3 : index
    %c4_76 = arith.constant 4 : index
    %92 = memref.load %arg6[%c3_75, %c4_76] : memref<8x8xf32, #tpu.memory_space<smem>>
    %93 = vector.broadcast %92 : f32 to vector<1x128xf32>
    %94 = arith.mulf %91, %93 : vector<1x128xf32>
    %95 = arith.addf %90, %94 : vector<1x128xf32>
    %c4_77 = arith.constant 4 : index
    %c0_78 = arith.constant 0 : index
    %96 = vector.load %arg7[%c4_77, %c0_78] : memref<8x128xf32, #tpu.memory_space<vmem>>, vector<1x128xf32>
    tpu.vector_store %arg7[%c4_77, %c0_78], %95 {strides = array<i32>} : memref<8x128xf32, #tpu.memory_space<vmem>>, vector<1x128xf32>,
    %97 = arith.negf %95 : vector<1x128xf32>
    %98 = math.exp %97 : vector<1x128xf32>
    %cst_79 = arith.constant 1.000000e+00 : f32
    %99 = vector.broadcast %cst_79 : f32 to vector<1x128xf32>
    %100 = arith.addf %99, %98 : vector<1x128xf32>
    %101 = arith.divf %99, %100 : vector<1x128xf32>
    %c4_80 = arith.constant 4 : index
    %c0_81 = arith.constant 0 : index
    %102 = vector.load %arg8[%c4_80, %c0_81] : memref<8x128xf32, #tpu.memory_space<vmem>>, vector<1x128xf32>
    tpu.vector_store %arg8[%c4_80, %c0_81], %101 {strides = array<i32>} : memref<8x128xf32, #tpu.memory_space<vmem>>, vector<1x128xf32>,
    %c5 = arith.constant 5 : index
    %c0_82 = arith.constant 0 : index
    %103 = vector.load %arg7[%c5, %c0_82] : memref<8x128xf32, #tpu.memory_space<vmem>>, vector<1x128xf32>
    %c0_83 = arith.constant 0 : index
    %c0_84 = arith.constant 0 : index
    %104 = vector.load %arg8[%c0_83, %c0_84] : memref<8x128xf32, #tpu.memory_space<vmem>>, vector<1x128xf32>
    %c0_85 = arith.constant 0 : index
    %c5_86 = arith.constant 5 : index
    %105 = memref.load %arg6[%c0_85, %c5_86] : memref<8x8xf32, #tpu.memory_space<smem>>
    %106 = vector.broadcast %105 : f32 to vector<1x128xf32>
    %107 = arith.mulf %104, %106 : vector<1x128xf32>
    %108 = arith.addf %103, %107 : vector<1x128xf32>
    %c1_87 = arith.constant 1 : index
    %c0_88 = arith.constant 0 : index
    %109 = vector.load %arg8[%c1_87, %c0_88] : memref<8x128xf32, #tpu.memory_space<vmem>>, vector<1x128xf32>
    %c1_89 = arith.constant 1 : index
    %c5_90 = arith.constant 5 : index
    %110 = memref.load %arg6[%c1_89, %c5_90] : memref<8x8xf32, #tpu.memory_space<smem>>
    %111 = vector.broadcast %110 : f32 to vector<1x128xf32>
    %112 = arith.mulf %109, %111 : vector<1x128xf32>
    %113 = arith.addf %108, %112 : vector<1x128xf32>
    %c2_91 = arith.constant 2 : index
    %c0_92 = arith.constant 0 : index
    %114 = vector.load %arg8[%c2_91, %c0_92] : memref<8x128xf32, #tpu.memory_space<vmem>>, vector<1x128xf32>
    %c2_93 = arith.constant 2 : index
    %c5_94 = arith.constant 5 : index
    %115 = memref.load %arg6[%c2_93, %c5_94] : memref<8x8xf32, #tpu.memory_space<smem>>
    %116 = vector.broadcast %115 : f32 to vector<1x128xf32>
    %117 = arith.mulf %114, %116 : vector<1x128xf32>
    %118 = arith.addf %113, %117 : vector<1x128xf32>
    %c3_95 = arith.constant 3 : index
    %c0_96 = arith.constant 0 : index
    %119 = vector.load %arg8[%c3_95, %c0_96] : memref<8x128xf32, #tpu.memory_space<vmem>>, vector<1x128xf32>
    %c3_97 = arith.constant 3 : index
    %c5_98 = arith.constant 5 : index
    %120 = memref.load %arg6[%c3_97, %c5_98] : memref<8x8xf32, #tpu.memory_space<smem>>
    %121 = vector.broadcast %120 : f32 to vector<1x128xf32>
    %122 = arith.mulf %119, %121 : vector<1x128xf32>
    %123 = arith.addf %118, %122 : vector<1x128xf32>
    %c4_99 = arith.constant 4 : index
    %c0_100 = arith.constant 0 : index
    %124 = vector.load %arg8[%c4_99, %c0_100] : memref<8x128xf32, #tpu.memory_space<vmem>>, vector<1x128xf32>
    %c4_101 = arith.constant 4 : index
    %c5_102 = arith.constant 5 : index
    %125 = memref.load %arg6[%c4_101, %c5_102] : memref<8x8xf32, #tpu.memory_space<smem>>
    %126 = vector.broadcast %125 : f32 to vector<1x128xf32>
    %127 = arith.mulf %124, %126 : vector<1x128xf32>
    %128 = arith.addf %123, %127 : vector<1x128xf32>
    %c5_103 = arith.constant 5 : index
    %c0_104 = arith.constant 0 : index
    %129 = vector.load %arg7[%c5_103, %c0_104] : memref<8x128xf32, #tpu.memory_space<vmem>>, vector<1x128xf32>
    tpu.vector_store %arg7[%c5_103, %c0_104], %128 {strides = array<i32>} : memref<8x128xf32, #tpu.memory_space<vmem>>, vector<1x128xf32>,
    %130 = arith.negf %128 : vector<1x128xf32>
    %131 = math.exp %130 : vector<1x128xf32>
    %cst_105 = arith.constant 1.000000e+00 : f32
    %132 = vector.broadcast %cst_105 : f32 to vector<1x128xf32>
    %133 = arith.addf %132, %131 : vector<1x128xf32>
    %134 = arith.divf %132, %133 : vector<1x128xf32>
    %c5_106 = arith.constant 5 : index
    %c0_107 = arith.constant 0 : index
    %135 = vector.load %arg8[%c5_106, %c0_107] : memref<8x128xf32, #tpu.memory_space<vmem>>, vector<1x128xf32>
    tpu.vector_store %arg8[%c5_106, %c0_107], %134 {strides = array<i32>} : memref<8x128xf32, #tpu.memory_space<vmem>>, vector<1x128xf32>,
    %c6 = arith.constant 6 : index
    %c0_108 = arith.constant 0 : index
    %136 = vector.load %arg7[%c6, %c0_108] : memref<8x128xf32, #tpu.memory_space<vmem>>, vector<1x128xf32>
    %c0_109 = arith.constant 0 : index
    %c0_110 = arith.constant 0 : index
    %137 = vector.load %arg8[%c0_109, %c0_110] : memref<8x128xf32, #tpu.memory_space<vmem>>, vector<1x128xf32>
    %c0_111 = arith.constant 0 : index
    %c6_112 = arith.constant 6 : index
    %138 = memref.load %arg6[%c0_111, %c6_112] : memref<8x8xf32, #tpu.memory_space<smem>>
    %139 = vector.broadcast %138 : f32 to vector<1x128xf32>
    %140 = arith.mulf %137, %139 : vector<1x128xf32>
    %141 = arith.addf %136, %140 : vector<1x128xf32>
    %c1_113 = arith.constant 1 : index
    %c0_114 = arith.constant 0 : index
    %142 = vector.load %arg8[%c1_113, %c0_114] : memref<8x128xf32, #tpu.memory_space<vmem>>, vector<1x128xf32>
    %c1_115 = arith.constant 1 : index
    %c6_116 = arith.constant 6 : index
    %143 = memref.load %arg6[%c1_115, %c6_116] : memref<8x8xf32, #tpu.memory_space<smem>>
    %144 = vector.broadcast %143 : f32 to vector<1x128xf32>
    %145 = arith.mulf %142, %144 : vector<1x128xf32>
    %146 = arith.addf %141, %145 : vector<1x128xf32>
    %c2_117 = arith.constant 2 : index
    %c0_118 = arith.constant 0 : index
    %147 = vector.load %arg8[%c2_117, %c0_118] : memref<8x128xf32, #tpu.memory_space<vmem>>, vector<1x128xf32>
    %c2_119 = arith.constant 2 : index
    %c6_120 = arith.constant 6 : index
    %148 = memref.load %arg6[%c2_119, %c6_120] : memref<8x8xf32, #tpu.memory_space<smem>>
    %149 = vector.broadcast %148 : f32 to vector<1x128xf32>
    %150 = arith.mulf %147, %149 : vector<1x128xf32>
    %151 = arith.addf %146, %150 : vector<1x128xf32>
    %c3_121 = arith.constant 3 : index
    %c0_122 = arith.constant 0 : index
    %152 = vector.load %arg8[%c3_121, %c0_122] : memref<8x128xf32, #tpu.memory_space<vmem>>, vector<1x128xf32>
    %c3_123 = arith.constant 3 : index
    %c6_124 = arith.constant 6 : index
    %153 = memref.load %arg6[%c3_123, %c6_124] : memref<8x8xf32, #tpu.memory_space<smem>>
    %154 = vector.broadcast %153 : f32 to vector<1x128xf32>
    %155 = arith.mulf %152, %154 : vector<1x128xf32>
    %156 = arith.addf %151, %155 : vector<1x128xf32>
    %c4_125 = arith.constant 4 : index
    %c0_126 = arith.constant 0 : index
    %157 = vector.load %arg8[%c4_125, %c0_126] : memref<8x128xf32, #tpu.memory_space<vmem>>, vector<1x128xf32>
    %c4_127 = arith.constant 4 : index
    %c6_128 = arith.constant 6 : index
    %158 = memref.load %arg6[%c4_127, %c6_128] : memref<8x8xf32, #tpu.memory_space<smem>>
    %159 = vector.broadcast %158 : f32 to vector<1x128xf32>
    %160 = arith.mulf %157, %159 : vector<1x128xf32>
    %161 = arith.addf %156, %160 : vector<1x128xf32>
    %c5_129 = arith.constant 5 : index
    %c0_130 = arith.constant 0 : index
    %162 = vector.load %arg8[%c5_129, %c0_130] : memref<8x128xf32, #tpu.memory_space<vmem>>, vector<1x128xf32>
    %c5_131 = arith.constant 5 : index
    %c6_132 = arith.constant 6 : index
    %163 = memref.load %arg6[%c5_131, %c6_132] : memref<8x8xf32, #tpu.memory_space<smem>>
    %164 = vector.broadcast %163 : f32 to vector<1x128xf32>
    %165 = arith.mulf %162, %164 : vector<1x128xf32>
    %166 = arith.addf %161, %165 : vector<1x128xf32>
    %c6_133 = arith.constant 6 : index
    %c0_134 = arith.constant 0 : index
    %167 = vector.load %arg7[%c6_133, %c0_134] : memref<8x128xf32, #tpu.memory_space<vmem>>, vector<1x128xf32>
    tpu.vector_store %arg7[%c6_133, %c0_134], %166 {strides = array<i32>} : memref<8x128xf32, #tpu.memory_space<vmem>>, vector<1x128xf32>,
    %168 = arith.negf %166 : vector<1x128xf32>
    %169 = math.exp %168 : vector<1x128xf32>
    %cst_135 = arith.constant 1.000000e+00 : f32
    %170 = vector.broadcast %cst_135 : f32 to vector<1x128xf32>
    %171 = arith.addf %170, %169 : vector<1x128xf32>
    %172 = arith.divf %170, %171 : vector<1x128xf32>
    %c6_136 = arith.constant 6 : index
    %c0_137 = arith.constant 0 : index
    %173 = vector.load %arg8[%c6_136, %c0_137] : memref<8x128xf32, #tpu.memory_space<vmem>>, vector<1x128xf32>
    tpu.vector_store %arg8[%c6_136, %c0_137], %172 {strides = array<i32>} : memref<8x128xf32, #tpu.memory_space<vmem>>, vector<1x128xf32>,
    %c7 = arith.constant 7 : index
    %c0_138 = arith.constant 0 : index
    %174 = vector.load %arg7[%c7, %c0_138] : memref<8x128xf32, #tpu.memory_space<vmem>>, vector<1x128xf32>
    %c0_139 = arith.constant 0 : index
    %c0_140 = arith.constant 0 : index
    %175 = vector.load %arg8[%c0_139, %c0_140] : memref<8x128xf32, #tpu.memory_space<vmem>>, vector<1x128xf32>
    %c0_141 = arith.constant 0 : index
    %c7_142 = arith.constant 7 : index
    %176 = memref.load %arg6[%c0_141, %c7_142] : memref<8x8xf32, #tpu.memory_space<smem>>
    %177 = vector.broadcast %176 : f32 to vector<1x128xf32>
    %178 = arith.mulf %175, %177 : vector<1x128xf32>
    %179 = arith.addf %174, %178 : vector<1x128xf32>
    %c1_143 = arith.constant 1 : index
    %c0_144 = arith.constant 0 : index
    %180 = vector.load %arg8[%c1_143, %c0_144] : memref<8x128xf32, #tpu.memory_space<vmem>>, vector<1x128xf32>
    %c1_145 = arith.constant 1 : index
    %c7_146 = arith.constant 7 : index
    %181 = memref.load %arg6[%c1_145, %c7_146] : memref<8x8xf32, #tpu.memory_space<smem>>
    %182 = vector.broadcast %181 : f32 to vector<1x128xf32>
    %183 = arith.mulf %180, %182 : vector<1x128xf32>
    %184 = arith.addf %179, %183 : vector<1x128xf32>
    %c2_147 = arith.constant 2 : index
    %c0_148 = arith.constant 0 : index
    %185 = vector.load %arg8[%c2_147, %c0_148] : memref<8x128xf32, #tpu.memory_space<vmem>>, vector<1x128xf32>
    %c2_149 = arith.constant 2 : index
    %c7_150 = arith.constant 7 : index
    %186 = memref.load %arg6[%c2_149, %c7_150] : memref<8x8xf32, #tpu.memory_space<smem>>
    %187 = vector.broadcast %186 : f32 to vector<1x128xf32>
    %188 = arith.mulf %185, %187 : vector<1x128xf32>
    %189 = arith.addf %184, %188 : vector<1x128xf32>
    %c3_151 = arith.constant 3 : index
    %c0_152 = arith.constant 0 : index
    %190 = vector.load %arg8[%c3_151, %c0_152] : memref<8x128xf32, #tpu.memory_space<vmem>>, vector<1x128xf32>
    %c3_153 = arith.constant 3 : index
    %c7_154 = arith.constant 7 : index
    %191 = memref.load %arg6[%c3_153, %c7_154] : memref<8x8xf32, #tpu.memory_space<smem>>
    %192 = vector.broadcast %191 : f32 to vector<1x128xf32>
    %193 = arith.mulf %190, %192 : vector<1x128xf32>
    %194 = arith.addf %189, %193 : vector<1x128xf32>
    %c4_155 = arith.constant 4 : index
    %c0_156 = arith.constant 0 : index
    %195 = vector.load %arg8[%c4_155, %c0_156] : memref<8x128xf32, #tpu.memory_space<vmem>>, vector<1x128xf32>
    %c4_157 = arith.constant 4 : index
    %c7_158 = arith.constant 7 : index
    %196 = memref.load %arg6[%c4_157, %c7_158] : memref<8x8xf32, #tpu.memory_space<smem>>
    %197 = vector.broadcast %196 : f32 to vector<1x128xf32>
    %198 = arith.mulf %195, %197 : vector<1x128xf32>
    %199 = arith.addf %194, %198 : vector<1x128xf32>
    %c5_159 = arith.constant 5 : index
    %c0_160 = arith.constant 0 : index
    %200 = vector.load %arg8[%c5_159, %c0_160] : memref<8x128xf32, #tpu.memory_space<vmem>>, vector<1x128xf32>
    %c5_161 = arith.constant 5 : index
    %c7_162 = arith.constant 7 : index
    %201 = memref.load %arg6[%c5_161, %c7_162] : memref<8x8xf32, #tpu.memory_space<smem>>
    %202 = vector.broadcast %201 : f32 to vector<1x128xf32>
    %203 = arith.mulf %200, %202 : vector<1x128xf32>
    %204 = arith.addf %199, %203 : vector<1x128xf32>
    %c6_163 = arith.constant 6 : index
    %c0_164 = arith.constant 0 : index
    %205 = vector.load %arg8[%c6_163, %c0_164] : memref<8x128xf32, #tpu.memory_space<vmem>>, vector<1x128xf32>
    %c6_165 = arith.constant 6 : index
    %c7_166 = arith.constant 7 : index
    %206 = memref.load %arg6[%c6_165, %c7_166] : memref<8x8xf32, #tpu.memory_space<smem>>
    %207 = vector.broadcast %206 : f32 to vector<1x128xf32>
    %208 = arith.mulf %205, %207 : vector<1x128xf32>
    %209 = arith.addf %204, %208 : vector<1x128xf32>
    %c7_167 = arith.constant 7 : index
    %c0_168 = arith.constant 0 : index
    %210 = vector.load %arg7[%c7_167, %c0_168] : memref<8x128xf32, #tpu.memory_space<vmem>>, vector<1x128xf32>
    tpu.vector_store %arg7[%c7_167, %c0_168], %209 {strides = array<i32>} : memref<8x128xf32, #tpu.memory_space<vmem>>, vector<1x128xf32>,
    return
  }
  func.func @transform_0(%arg0: i32) -> (i32, i32) {
    %c0_i32 = arith.constant 0 : i32
    %c0_i32_0 = arith.constant 0 : i32
    return %arg0, %c0_i32 : i32, i32
  }
  func.func @transform_1(%arg0: i32) -> (i32, i32) {
    %c0_i32 = arith.constant 0 : i32
    %c0_i32_0 = arith.constant 0 : i32
    %c0_i32_1 = arith.constant 0 : i32
    return %c0_i32, %c0_i32_0 : i32, i32
  }
  func.func @transform_2(%arg0: i32) -> (i32, i32) {
    %c0_i32 = arith.constant 0 : i32
    %c0_i32_0 = arith.constant 0 : i32
    %c0_i32_1 = arith.constant 0 : i32
    return %c0_i32, %c0_i32_0 : i32, i32
  }
  func.func @transform_3(%arg0: i32) -> (i32, i32) {
    %c0_i32 = arith.constant 0 : i32
    %c0_i32_0 = arith.constant 0 : i32
    %c0_i32_1 = arith.constant 0 : i32
    return %c0_i32, %c0_i32_0 : i32, i32
  }
  func.func @transform_4(%arg0: i32) -> (i32, i32) {
    %c0_i32 = arith.constant 0 : i32
    %c0_i32_0 = arith.constant 0 : i32
    %c0_i32_1 = arith.constant 0 : i32
    return %c0_i32, %c0_i32_0 : i32, i32
  }
  func.func @transform_5(%arg0: i32) -> (i32, i32) {
    %c0_i32 = arith.constant 0 : i32
    %c0_i32_0 = arith.constant 0 : i32
    %c0_i32_1 = arith.constant 0 : i32
    return %c0_i32, %c0_i32_0 : i32, i32
  }
  func.func @transform_6(%arg0: i32) -> (i32, i32) {
    %c0_i32 = arith.constant 0 : i32
    %c0_i32_0 = arith.constant 0 : i32
    return %c0_i32, %arg0 : i32, i32
  }
}

</mosaic_0001>

<llo_original>
// kernel: tpu_custom_call.1
$region0: #{tpu_custom_call.1}
  #allocation0 [shape = 'u32[]', space=smem, size = 0x4, offset = 0x4, fixed_abs, tag = 'smem constant byte address 0x4 - core index']
  #allocation1 [shape = 'u32[144,128]{1,0:T(1,128)}', space=vmem, size = 0x12000, scoped, tag = 'internal scratch']
  #allocation2 [shape = 'f32[8,128]{1,0:T(8,128)}', space=vmem, size = 0x1000, scoped, tag = 'scratch operand']
  %s0 = inlined_call_operand.vmem [shape: f32[128,16], index: 0, kind: input, shape index: {}]
  %s1 = inlined_call_operand.vmem [shape: f32[16,32], index: 1, kind: input, shape index: {}]
  %s2 = inlined_call_operand.vmem [shape: f32[1,32], index: 2, kind: input, shape index: {}]
  %s3 = inlined_call_operand.vmem [shape: f32[8,32], index: 3, kind: input, shape index: {}]
  %s4 = inlined_call_operand.vmem [shape: f32[8,1], index: 4, kind: input, shape index: {}]
  %s5 = inlined_call_operand.vmem [shape: f32[8,8], index: 5, kind: input, shape index: {}]
  %s6 = inlined_call_operand.hbm [shape: f32[8,128], index: 6, kind: output, shape index: {}]
  %s7 = sld [smem:[#allocation0]]
  $region38: #{tpu_custom_call.1} parent=0
    _
  %s9 = ssub.s32 1, %s7
  %s10 = scalar_select 0, %s9, %s7
  $region1: #{tpu_custom_call.1} parent=0
    #allocation3 [shape = 'u8[4096]{0}', space=smem, size = 0x1000, scoped, tag = 'input window, operand 5, single buffered']
    #allocation4 [shape = 's32[1]{0}', space=sflag, size = 0x4, scoped, tag = 'scoped memory for tpu_custom_call.1']
    #allocation5 [shape = 's32[1]{0}', space=sflag, size = 0x4, scoped, tag = 'scoped memory for tpu_custom_call.1']
    #allocation6 [shape = 'u8[4096]{0}', space=vmem, size = 0x1000, scoped, tag = 'output window, operand 0, single buffered']
    %11 = vsyncpa [#allocation5], 0
    %12 = vsyncpa [#allocation4], 0
    // Predicated region
    $region2: #{tpu_custom_call.1} parent=1 // pred_check
      _
    $region3: #{tpu_custom_call.1} parent=1 // pred_check_branch
      %14 = sbr.rel (0) target = $region5
    $region4: #{tpu_custom_call.1} parent=1 // pred_region
      _
    $region5: #{tpu_custom_call.1} parent=1 // pred_fallthru
      _
    // Predicated region
    $region6: #{tpu_custom_call.1} parent=1 // pred_check
      _
    $region7: #{tpu_custom_call.1} parent=1 // pred_check_branch
      %16 = sbr.rel (0) target = $region9
    $region8: #{tpu_custom_call.1} parent=1 // pred_region
      _
    $region9: #{tpu_custom_call.1} parent=1 // pred_fallthru
      _
    // Predicated region
    $region10: #{tpu_custom_call.1} parent=1 // pred_check
      _
    $region11: #{tpu_custom_call.1} parent=1 // pred_check_branch
      %18 = sbr.rel (0) target = $region13
    $region12: #{tpu_custom_call.1} parent=1 // pred_region
      _
    $region13: #{tpu_custom_call.1} parent=1 // pred_fallthru
      _
    // Predicated region
    $region14: #{tpu_custom_call.1} parent=1 // pred_check
      _
    $region15: #{tpu_custom_call.1} parent=1 // pred_check_branch
      %20 = sbr.rel (0) target = $region17
    $region16: #{tpu_custom_call.1} parent=1 // pred_region
      _
    $region17: #{tpu_custom_call.1} parent=1 // pred_fallthru
      _
    // Predicated region
    $region18: #{tpu_custom_call.1} parent=1 // pred_check
      _
    $region19: #{tpu_custom_call.1} parent=1 // pred_check_branch
      %22 = sbr.rel (0) target = $region21
    $region20: #{tpu_custom_call.1} parent=1 // pred_region
      _
    $region21: #{tpu_custom_call.1} parent=1 // pred_fallthru
      _
    // Predicated region
    $region22: #{tpu_custom_call.1} parent=1 // pred_check
      _
    $region23: #{tpu_custom_call.1} parent=1 // pred_check_branch
      %24 = sbr.rel (0) target = $region25
    $region24: #{tpu_custom_call.1} parent=1 // pred_region
      %s26 = ssub.s32 128, 128
      %27 = vsyncadd [#allocation5], %s26
      %s29 = sshll.u32 %s5, 4
      %s30 = int_to_ptr.vmem [resolvable:$true] %s29
      %32 = dma.vmem_to_smem %s30, 128, [#allocation3], [#allocation5]
    $region25: #{tpu_custom_call.1} parent=1 // pred_fallthru
      _
    // Predicated region
    $region26: #{tpu_custom_call.1} parent=1 // pred_check
      _
    $region27: #{tpu_custom_call.1} parent=1 // pred_check_branch
      %34 = sbr.rel (0) target = $region29
    $region28: #{tpu_custom_call.1} parent=1 // pred_region
      %35 = dma.done [#allocation5], 128
    $region29: #{tpu_custom_call.1} parent=1 // pred_fallthru
      _
    %36 = sfence
    %v37 = vld [vmem:[%s0] sm:$0xff]
    %v38 = vld [vmem:[%s0 + $0x8] sm:$0xff]
    %v39 = vld [vmem:[%s0 + $0x10] sm:$0xff]
    %v40 = vld [vmem:[%s0 + $0x18] sm:$0xff]
    %v41 = vld [vmem:[%s0 + $0x20] sm:$0xff]
    %v42 = vld [vmem:[%s0 + $0x28] sm:$0xff]
    %v43 = vld [vmem:[%s0 + $0x30] sm:$0xff]
    %v44 = vld [vmem:[%s0 + $0x38] sm:$0xff]
    %v45 = vld [vmem:[%s0 + $0x40] sm:$0xff]
    %v46 = vld [vmem:[%s0 + $0x48] sm:$0xff]
    %v47 = vld [vmem:[%s0 + $0x50] sm:$0xff]
    %v48 = vld [vmem:[%s0 + $0x58] sm:$0xff]
    %v49 = vld [vmem:[%s0 + $0x60] sm:$0xff]
    %v50 = vld [vmem:[%s0 + $0x68] sm:$0xff]
    %v51 = vld [vmem:[%s0 + $0x70] sm:$0xff]
    %v52 = vld [vmem:[%s0 + $0x78] sm:$0xff]
    %v53 = vld [vmem:[%s1] sm:$0xff]
    %v54 = vld [vmem:[%s1 + $0x8] sm:$0xff]
    %v55 = vld [vmem:[%s2] sm:$0x1]
    %v57 = vlaneseq
    %v58 = vshrl.u32 %v57, 7
    %v59 = vsub.s32 0, %v58
    %v60 = vrot.slane %v55, %v59
    %vm62 = vcmask 130048
    %v64 = vsel %vm62, %v37, 0
    %v67 = vsel %vm62, %v38, 0
    %v70 = vsel %vm62, %v39, 0
    %v73 = vsel %vm62, %v40, 0
    %v76 = vsel %vm62, %v41, 0
    %v79 = vsel %vm62, %v42, 0
    %v82 = vsel %vm62, %v43, 0
    %v85 = vsel %vm62, %v44, 0
    %v88 = vsel %vm62, %v45, 0
    %v91 = vsel %vm62, %v46, 0
    %v94 = vsel %vm62, %v47, 0
    %v97 = vsel %vm62, %v48, 0
    %v100 = vsel %vm62, %v49, 0
    %v103 = vsel %vm62, %v50, 0
    %v106 = vsel %vm62, %v51, 0
    %v109 = vsel %vm62, %v52, 0
    %111 = vmatprep.subr.mxu0 0.0
    %112 = vmatpush1.msra.mxu0 0.0
    %113 = vmatprep.subr.mxu0 0.0
    %114 = vmatpush1.msra.mxu0 0.0
    %115 = vmatprep.subr.mxu0 0.0
    %116 = vmatpush1.msra.mxu0 0.0
    %117 = vmatprep.subr.mxu0 0.0
    %118 = vmatpush1.msra.mxu0 0.0
    %119 = vmatprep.subr.mxu0 0.0
    %120 = vmatpush1.msra.mxu0 0.0
    %121 = vmatprep.subr.mxu0 0.0
    %122 = vmatpush1.msra.mxu0 0.0
    %123 = vmatprep.subr.mxu0 0.0
    %124 = vmatpush1.msra.mxu0 0.0
    %125 = vmatprep.subr.mxu0 0.0
    %126 = vmatpush1.msra.mxu0 0.0
    %127 = vmatprep.subr.mxu0 0.0
    %128 = vmatpush1.msra.mxu0 0.0
    %129 = vmatprep.subr.mxu0 0.0
    %130 = vmatpush1.msra.mxu0 0.0
    %131 = vmatprep.subr.mxu0 0.0
    %132 = vmatpush1.msra.mxu0 0.0
    %133 = vmatprep.subr.mxu0 0.0
    %134 = vmatpush1.msra.mxu0 0.0
    %135 = vmatprep.subr.mxu0 0.0
    %136 = vmatpush1.msra.mxu0 0.0
    %137 = vmatprep.subr.mxu0 0.0
    %138 = vmatpush1.msra.mxu0 0.0
    %139 = vmatprep.subr.mxu0 0.0
    %140 = vmatpush1.msra.mxu0 %v54
    %141 = vmatprep.subr.mxu0 0.0
    %142 = vmatpush1.msra.mxu0 %v53
    %143 = vmatprep.subr.mxu0 0.0
    %144 = vmatpush2.msra.mxu0 0.0
    %145 = vmatprep.subr.mxu0 0.0
    %146 = vmatpush2.msra.mxu0 0.0
    %147 = vmatprep.subr.mxu0 0.0
    %148 = vmatpush2.msra.mxu0 0.0
    %149 = vmatprep.subr.mxu0 0.0
    %150 = vmatpush2.msra.mxu0 0.0
    %151 = vmatprep.subr.mxu0 0.0
    %152 = vmatpush2.msra.mxu0 0.0
    %153 = vmatprep.subr.mxu0 0.0
    %154 = vmatpush2.msra.mxu0 0.0
    %155 = vmatprep.subr.mxu0 0.0
    %156 = vmatpush2.msra.mxu0 0.0
    %157 = vmatprep.subr.mxu0 0.0
    %158 = vmatpush2.msra.mxu0 0.0
    %159 = vmatprep.subr.mxu0 0.0
    %160 = vmatpush2.msra.mxu0 0.0
    %161 = vmatprep.subr.mxu0 0.0
    %162 = vmatpush2.msra.mxu0 0.0
    %163 = vmatprep.subr.mxu0 0.0
    %164 = vmatpush2.msra.mxu0 0.0
    %165 = vmatprep.subr.mxu0 0.0
    %166 = vmatpush2.msra.mxu0 0.0
    %167 = vmatprep.subr.mxu0 0.0
    %168 = vmatpush2.msra.mxu0 0.0
    %169 = vmatprep.subr.mxu0 0.0
    %170 = vmatpush2.msra.mxu0 0.0
    %171 = vmatprep.subr.mxu0 0.0
    %172 = vmatpush2.msra.mxu0 0.0
    %173 = vmatprep.subr.mxu0 0.0
    %174 = vmatpush2.msra.mxu0 0.0
    %175 = vmatprep.mubr.f32.mxu0 0.0
    %176 = vmatmul.mubr.f32.gmra.mxu0 %v64
    %v177 = vpop.f32.mrf.mxu0
    %v178 = vadd.f32 %v60, %v177
    %v179 = vpop.f32.mrf.mxu0
    %180 = vmatprep.mubr.f32.mxu0 0.0
    %181 = vmatmul.mubr.f32.gmra.mxu0 %v67
    %v182 = vpop.f32.mrf.mxu0
    %v183 = vadd.f32 %v60, %v182
    %v184 = vpop.f32.mrf.mxu0
    %185 = vmatprep.mubr.f32.mxu0 0.0
    %186 = vmatmul.mubr.f32.gmra.mxu0 %v70
    %v187 = vpop.f32.mrf.mxu0
    %v188 = vadd.f32 %v60, %v187
    %v189 = vpop.f32.mrf.mxu0
    %190 = vmatprep.mubr.f32.mxu0 0.0
    %191 = vmatmul.mubr.f32.gmra.mxu0 %v73
    %v192 = vpop.f32.mrf.mxu0
    %v193 = vadd.f32 %v60, %v192
    %v194 = vpop.f32.mrf.mxu0
    %195 = vmatprep.mubr.f32.mxu0 0.0
    %196 = vmatmul.mubr.f32.gmra.mxu0 %v76
    %v197 = vpop.f32.mrf.mxu0
    %v198 = vadd.f32 %v60, %v197
    %v199 = vpop.f32.mrf.mxu0
    %200 = vmatprep.mubr.f32.mxu0 0.0
    %201 = vmatmul.mubr.f32.gmra.mxu0 %v79
    %v202 = vpop.f32.mrf.mxu0
    %v203 = vadd.f32 %v60, %v202
    %v204 = vpop.f32.mrf.mxu0
    %205 = vmatprep.mubr.f32.mxu0 0.0
    %206 = vmatmul.mubr.f32.gmra.mxu0 %v82
    %v207 = vpop.f32.mrf.mxu0
    %v208 = vadd.f32 %v60, %v207
    %v209 = vpop.f32.mrf.mxu0
    %210 = vmatprep.mubr.f32.mxu0 0.0
    %211 = vmatmul.mubr.f32.gmra.mxu0 %v85
    %v212 = vpop.f32.mrf.mxu0
    %v213 = vadd.f32 %v60, %v212
    %v214 = vpop.f32.mrf.mxu0
    %215 = vmatprep.mubr.f32.mxu0 0.0
    %216 = vmatmul.mubr.f32.gmra.mxu0 %v88
    %v217 = vpop.f32.mrf.mxu0
    %v218 = vadd.f32 %v60, %v217
    %v219 = vpop.f32.mrf.mxu0
    %220 = vmatprep.mubr.f32.mxu0 0.0
    %221 = vmatmul.mubr.f32.gmra.mxu0 %v91
    %v222 = vpop.f32.mrf.mxu0
    %v223 = vadd.f32 %v60, %v222
    %v224 = vpop.f32.mrf.mxu0
    %225 = vmatprep.mubr.f32.mxu0 0.0
    %226 = vmatmul.mubr.f32.gmra.mxu0 %v94
    %v227 = vpop.f32.mrf.mxu0
    %v228 = vadd.f32 %v60, %v227
    %v229 = vpop.f32.mrf.mxu0
    %230 = vmatprep.mubr.f32.mxu0 0.0
    %231 = vmatmul.mubr.f32.gmra.mxu0 %v97
    %v232 = vpop.f32.mrf.mxu0
    %v233 = vadd.f32 %v60, %v232
    %v234 = vpop.f32.mrf.mxu0
    %235 = vmatprep.mubr.f32.mxu0 0.0
    %236 = vmatmul.mubr.f32.gmra.mxu0 %v100
    %v237 = vpop.f32.mrf.mxu0
    %v238 = vadd.f32 %v60, %v237
    %v239 = vpop.f32.mrf.mxu0
    %240 = vmatprep.mubr.f32.mxu0 0.0
    %241 = vmatmul.mubr.f32.gmra.mxu0 %v103
    %v242 = vpop.f32.mrf.mxu0
    %v243 = vadd.f32 %v60, %v242
    %v244 = vpop.f32.mrf.mxu0
    %245 = vmatprep.mubr.f32.mxu0 0.0
    %246 = vmatmul.mubr.f32.gmra.mxu0 %v106
    %v247 = vpop.f32.mrf.mxu0
    %v248 = vadd.f32 %v60, %v247
    %v249 = vpop.f32.mrf.mxu0
    %250 = vmatprep.mubr.f32.mxu0 0.0
    %251 = vmatmul.mubr.f32.gmra.mxu0 %v109
    %v252 = vpop.f32.mrf.mxu0
    %v253 = vadd.f32 %v60, %v252
    %v254 = vpop.f32.mrf.mxu0
    %255 = vdwg.mxu0
    %v256 = vmax.f32 %v178, 0.0
    %v257 = vmax.f32 %v183, 0.0
    %v258 = vmax.f32 %v188, 0.0
    %v259 = vmax.f32 %v193, 0.0
    %v260 = vmax.f32 %v198, 0.0
    %v261 = vmax.f32 %v203, 0.0
    %v262 = vmax.f32 %v208, 0.0
    %v263 = vmax.f32 %v213, 0.0
    %v264 = vmax.f32 %v218, 0.0
    %v265 = vmax.f32 %v223, 0.0
    %v266 = vmax.f32 %v228, 0.0
    %v267 = vmax.f32 %v233, 0.0
    %v268 = vmax.f32 %v238, 0.0
    %v269 = vmax.f32 %v243, 0.0
    %v270 = vmax.f32 %v248, 0.0
    %v271 = vmax.f32 %v253, 0.0
    %v272 = vld [vmem:[%s3] sm:$0xff]
    %v273 = vld [vmem:[%s4] sm:$0xff]
    %275 = vset.pattern.permute.xlu0 0
    %276 = vperm.xlu0 %275, %v273
    %v277 = vpop.permute.xlu0 %276
    %vm279 = vcmask 261120
    %v281 = vsel %vm279, %v272, 0
    %v284 = vsel %vm279, %v256, 0
    %v287 = vsel %vm279, %v257, 0
    %v290 = vsel %vm279, %v258, 0
    %v293 = vsel %vm279, %v259, 0
    %v296 = vsel %vm279, %v260, 0
    %v299 = vsel %vm279, %v261, 0
    %v302 = vsel %vm279, %v262, 0
    %v305 = vsel %vm279, %v263, 0
    %v308 = vsel %vm279, %v264, 0
    %v311 = vsel %vm279, %v265, 0
    %v314 = vsel %vm279, %v266, 0
    %v317 = vsel %vm279, %v267, 0
    %v320 = vsel %vm279, %v268, 0
    %v323 = vsel %vm279, %v269, 0
    %v326 = vsel %vm279, %v270, 0
    %v329 = vsel %vm279, %v271, 0
    %331 = vmatprep.subr.mxu0 0.0
    %332 = vmatpush1.xpose.msra.mxu0 %v329
    %333 = vmatprep.subr.mxu0 0.0
    %334 = vmatpush1.xpose.msra.mxu0 %v326
    %335 = vmatprep.subr.mxu0 0.0
    %336 = vmatpush1.xpose.msra.mxu0 %v323
    %337 = vmatprep.subr.mxu0 0.0
    %338 = vmatpush1.xpose.msra.mxu0 %v320
    %339 = vmatprep.subr.mxu0 0.0
    %340 = vmatpush1.xpose.msra.mxu0 %v317
    %341 = vmatprep.subr.mxu0 0.0
    %342 = vmatpush1.xpose.msra.mxu0 %v314
    %343 = vmatprep.subr.mxu0 0.0
    %344 = vmatpush1.xpose.msra.mxu0 %v311
    %345 = vmatprep.subr.mxu0 0.0
    %346 = vmatpush1.xpose.msra.mxu0 %v308
    %347 = vmatprep.subr.mxu0 0.0
    %348 = vmatpush1.xpose.msra.mxu0 %v305
    %349 = vmatprep.subr.mxu0 0.0
    %350 = vmatpush1.xpose.msra.mxu0 %v302
    %351 = vmatprep.subr.mxu0 0.0
    %352 = vmatpush1.xpose.msra.mxu0 %v299
    %353 = vmatprep.subr.mxu0 0.0
    %354 = vmatpush1.xpose.msra.mxu0 %v296
    %355 = vmatprep.subr.mxu0 0.0
    %356 = vmatpush1.xpose.msra.mxu0 %v293
    %357 = vmatprep.subr.mxu0 0.0
    %358 = vmatpush1.xpose.msra.mxu0 %v290
    %359 = vmatprep.subr.mxu0 0.0
    %360 = vmatpush1.xpose.msra.mxu0 %v287
    %361 = vmatprep.subr.mxu0 0.0
    %362 = vmatpush1.xpose.msra.mxu0 %v284
    %363 = vmatprep.subr.mxu0 0.0
    %364 = vmatpush2.xpose.msra.mxu0 0.0
    %365 = vmatprep.subr.mxu0 0.0
    %366 = vmatpush2.xpose.msra.mxu0 0.0
    %367 = vmatprep.subr.mxu0 0.0
    %368 = vmatpush2.xpose.msra.mxu0 0.0
    %369 = vmatprep.subr.mxu0 0.0
    %370 = vmatpush2.xpose.msra.mxu0 0.0
    %371 = vmatprep.subr.mxu0 0.0
    %372 = vmatpush2.xpose.msra.mxu0 0.0
    %373 = vmatprep.subr.mxu0 0.0
    %374 = vmatpush2.xpose.msra.mxu0 0.0
    %375 = vmatprep.subr.mxu0 0.0
    %376 = vmatpush2.xpose.msra.mxu0 0.0
    %377 = vmatprep.subr.mxu0 0.0
    %378 = vmatpush2.xpose.msra.mxu0 0.0
    %379 = vmatprep.subr.mxu0 0.0
    %380 = vmatpush2.xpose.msra.mxu0 0.0
    %381 = vmatprep.subr.mxu0 0.0
    %382 = vmatpush2.xpose.msra.mxu0 0.0
    %383 = vmatprep.subr.mxu0 0.0
    %384 = vmatpush2.xpose.msra.mxu0 0.0
    %385 = vmatprep.subr.mxu0 0.0
    %386 = vmatpush2.xpose.msra.mxu0 0.0
    %387 = vmatprep.subr.mxu0 0.0
    %388 = vmatpush2.xpose.msra.mxu0 0.0
    %389 = vmatprep.subr.mxu0 0.0
    %390 = vmatpush2.xpose.msra.mxu0 0.0
    %391 = vmatprep.subr.mxu0 0.0
    %392 = vmatpush2.xpose.msra.mxu0 0.0
    %393 = vmatprep.subr.mxu0 0.0
    %394 = vmatpush2.xpose.msra.mxu0 0.0
    %395 = vmatprep.mubr.f32.mxu0 0.0
    %396 = vmatmul.mubr.f32.gmra.mxu0 %v281
    %v397 = vpop.f32.mrf.mxu0
    %v398 = vadd.f32 %v277, %v397
    %v399 = vpop.f32.mrf.mxu0
    %400 = vdwg.mxu0
    %401 = vst [vmem:[#allocation6] sm:$0xff] %v398
    %v402 = vld [vmem:[#allocation6] sm:$0x1]
    %v403 = vxor.u32 %v402, 2147483648
    %v404 = vmul.f32 %v403, 1.442695
    %v405 = vpow.pop %v404
    %v406 = vadd.f32 %v405, 1.0
    %v407 = vrcp.pop %v406
    %v408 = vmul.f32 1.0, %v407
    %409 = vst [vmem:[#allocation2] sm:$0x1] %v408
    %v410 = vld [vmem:[#allocation6 + $0x1] sm:$0x1]
    %v411 = vld [vmem:[#allocation2] sm:$0x1]
    %s412 = sld [smem:[#allocation3 + $0x1]]
    %v413 = vstv %s412
    %v414 = vmul.f32 %v411, %v413
    %v415 = vadd.f32 %v410, %v414
    %416 = vst [vmem:[#allocation6 + $0x1] sm:$0x1] %v415
    %v417 = vxor.u32 %v415, 2147483648
    %v418 = vmul.f32 %v417, 1.442695
    %v419 = vpow.pop %v418
    %v420 = vadd.f32 %v419, 1.0
    %v421 = vrcp.pop %v420
    %v422 = vmul.f32 1.0, %v421
    %423 = vst [vmem:[#allocation2 + $0x1] sm:$0x1] %v422
    %v424 = vld [vmem:[#allocation6 + $0x2] sm:$0x1]
    %v425 = vld [vmem:[#allocation2] sm:$0x1]
    %s426 = sld [smem:[#allocation3 + $0x2]]
    %v427 = vstv %s426
    %v428 = vmul.f32 %v425, %v427
    %v429 = vadd.f32 %v424, %v428
    %v430 = vld [vmem:[#allocation2 + $0x1] sm:$0x1]
    %s431 = sld [smem:[#allocation3 + $0x82]]
    %v432 = vstv %s431
    %v433 = vmul.f32 %v430, %v432
    %v434 = vadd.f32 %v429, %v433
    %435 = vst [vmem:[#allocation6 + $0x2] sm:$0x1] %v434
    %v436 = vxor.u32 %v434, 2147483648
    %v437 = vmul.f32 %v436, 1.442695
    %v438 = vpow.pop %v437
    %v439 = vadd.f32 %v438, 1.0
    %v440 = vrcp.pop %v439
    %v441 = vmul.f32 1.0, %v440
    %442 = vst [vmem:[#allocation2 + $0x2] sm:$0x1] %v441
    %v443 = vld [vmem:[#allocation6 + $0x3] sm:$0x1]
    %v444 = vld [vmem:[#allocation2] sm:$0x1]
    %s445 = sld [smem:[#allocation3 + $0x3]]
    %v446 = vstv %s445
    %v447 = vmul.f32 %v444, %v446
    %v448 = vadd.f32 %v443, %v447
    %v449 = vld [vmem:[#allocation2 + $0x1] sm:$0x1]
    %s450 = sld [smem:[#allocation3 + $0x83]]
    %v451 = vstv %s450
    %v452 = vmul.f32 %v449, %v451
    %v453 = vadd.f32 %v448, %v452
    %v454 = vld [vmem:[#allocation2 + $0x2] sm:$0x1]
    %s455 = sld [smem:[#allocation3 + $0x103]]
    %v456 = vstv %s455
    %v457 = vmul.f32 %v454, %v456
    %v458 = vadd.f32 %v453, %v457
    %459 = vst [vmem:[#allocation6 + $0x3] sm:$0x1] %v458
    %v460 = vxor.u32 %v458, 2147483648
    %v461 = vmul.f32 %v460, 1.442695
    %v462 = vpow.pop %v461
    %v463 = vadd.f32 %v462, 1.0
    %v464 = vrcp.pop %v463
    %v465 = vmul.f32 1.0, %v464
    %466 = vst [vmem:[#allocation2 + $0x3] sm:$0x1] %v465
    %v467 = vld [vmem:[#allocation6 + $0x4] sm:$0x1]
    %v468 = vld [vmem:[#allocation2] sm:$0x1]
    %s469 = sld [smem:[#allocation3 + $0x4]]
    %v470 = vstv %s469
    %v471 = vmul.f32 %v468, %v470
    %v472 = vadd.f32 %v467, %v471
    %v473 = vld [vmem:[#allocation2 + $0x1] sm:$0x1]
    %s474 = sld [smem:[#allocation3 + $0x84]]
    %v475 = vstv %s474
    %v476 = vmul.f32 %v473, %v475
    %v477 = vadd.f32 %v472, %v476
    %v478 = vld [vmem:[#allocation2 + $0x2] sm:$0x1]
    %s479 = sld [smem:[#allocation3 + $0x104]]
    %v480 = vstv %s479
    %v481 = vmul.f32 %v478, %v480
    %v482 = vadd.f32 %v477, %v481
    %v483 = vld [vmem:[#allocation2 + $0x3] sm:$0x1]
    %s484 = sld [smem:[#allocation3 + $0x184]]
    %v485 = vstv %s484
    %v486 = vmul.f32 %v483, %v485
    %v487 = vadd.f32 %v482, %v486
    %488 = vst [vmem:[#allocation6 + $0x4] sm:$0x1] %v487
    %v489 = vxor.u32 %v487, 2147483648
    %v490 = vmul.f32 %v489, 1.442695
    %v491 = vpow.pop %v490
    %v492 = vadd.f32 %v491, 1.0
    %v493 = vrcp.pop %v492
    %v494 = vmul.f32 1.0, %v493
    %495 = vst [vmem:[#allocation2 + $0x4] sm:$0x1] %v494
    %v496 = vld [vmem:[#allocation6 + $0x5] sm:$0x1]
    %v497 = vld [vmem:[#allocation2] sm:$0x1]
    %s498 = sld [smem:[#allocation3 + $0x5]]
    %v499 = vstv %s498
    %v500 = vmul.f32 %v497, %v499
    %v501 = vadd.f32 %v496, %v500
    %v502 = vld [vmem:[#allocation2 + $0x1] sm:$0x1]
    %s503 = sld [smem:[#allocation3 + $0x85]]
    %v504 = vstv %s503
    %v505 = vmul.f32 %v502, %v504
    %v506 = vadd.f32 %v501, %v505
    %v507 = vld [vmem:[#allocation2 + $0x2] sm:$0x1]
    %s508 = sld [smem:[#allocation3 + $0x105]]
    %v509 = vstv %s508
    %v510 = vmul.f32 %v507, %v509
    %v511 = vadd.f32 %v506, %v510
    %v512 = vld [vmem:[#allocation2 + $0x3] sm:$0x1]
    %s513 = sld [smem:[#allocation3 + $0x185]]
    %v514 = vstv %s513
    %v515 = vmul.f32 %v512, %v514
    %v516 = vadd.f32 %v511, %v515
    %v517 = vld [vmem:[#allocation2 + $0x4] sm:$0x1]
    %s518 = sld [smem:[#allocation3 + $0x205]]
    %v519 = vstv %s518
    %v520 = vmul.f32 %v517, %v519
    %v521 = vadd.f32 %v516, %v520
    %522 = vst [vmem:[#allocation6 + $0x5] sm:$0x1] %v521
    %v523 = vxor.u32 %v521, 2147483648
    %v524 = vmul.f32 %v523, 1.442695
    %v525 = vpow.pop %v524
    %v526 = vadd.f32 %v525, 1.0
    %v527 = vrcp.pop %v526
    %v528 = vmul.f32 1.0, %v527
    %529 = vst [vmem:[#allocation2 + $0x5] sm:$0x1] %v528
    %v530 = vld [vmem:[#allocation6 + $0x6] sm:$0x1]
    %v531 = vld [vmem:[#allocation2] sm:$0x1]
    %s532 = sld [smem:[#allocation3 + $0x6]]
    %v533 = vstv %s532
    %v534 = vmul.f32 %v531, %v533
    %v535 = vadd.f32 %v530, %v534
    %v536 = vld [vmem:[#allocation2 + $0x1] sm:$0x1]
    %s537 = sld [smem:[#allocation3 + $0x86]]
    %v538 = vstv %s537
    %v539 = vmul.f32 %v536, %v538
    %v540 = vadd.f32 %v535, %v539
    %v541 = vld [vmem:[#allocation2 + $0x2] sm:$0x1]
    %s542 = sld [smem:[#allocation3 + $0x106]]
    %v543 = vstv %s542
    %v544 = vmul.f32 %v541, %v543
    %v545 = vadd.f32 %v540, %v544
    %v546 = vld [vmem:[#allocation2 + $0x3] sm:$0x1]
    %s547 = sld [smem:[#allocation3 + $0x186]]
    %v548 = vstv %s547
    %v549 = vmul.f32 %v546, %v548
    %v550 = vadd.f32 %v545, %v549
    %v551 = vld [vmem:[#allocation2 + $0x4] sm:$0x1]
    %s552 = sld [smem:[#allocation3 + $0x206]]
    %v553 = vstv %s552
    %v554 = vmul.f32 %v551, %v553
    %v555 = vadd.f32 %v550, %v554
    %v556 = vld [vmem:[#allocation2 + $0x5] sm:$0x1]
    %s557 = sld [smem:[#allocation3 + $0x286]]
    %v558 = vstv %s557
    %v559 = vmul.f32 %v556, %v558
    %v560 = vadd.f32 %v555, %v559
    %561 = vst [vmem:[#allocation6 + $0x6] sm:$0x1] %v560
    %v562 = vxor.u32 %v560, 2147483648
    %v563 = vmul.f32 %v562, 1.442695
    %v564 = vpow.pop %v563
    %v565 = vadd.f32 %v564, 1.0
    %v566 = vrcp.pop %v565
    %v567 = vmul.f32 1.0, %v566
    %568 = vst [vmem:[#allocation2 + $0x6] sm:$0x1] %v567
    %v569 = vld [vmem:[#allocation6 + $0x7] sm:$0x1]
    %v570 = vld [vmem:[#allocation2] sm:$0x1]
    %s571 = sld [smem:[#allocation3 + $0x7]]
    %v572 = vstv %s571
    %v573 = vmul.f32 %v570, %v572
    %v574 = vadd.f32 %v569, %v573
    %v575 = vld [vmem:[#allocation2 + $0x1] sm:$0x1]
    %s576 = sld [smem:[#allocation3 + $0x87]]
    %v577 = vstv %s576
    %v578 = vmul.f32 %v575, %v577
    %v579 = vadd.f32 %v574, %v578
    %v580 = vld [vmem:[#allocation2 + $0x2] sm:$0x1]
    %s581 = sld [smem:[#allocation3 + $0x107]]
    %v582 = vstv %s581
    %v583 = vmul.f32 %v580, %v582
    %v584 = vadd.f32 %v579, %v583
    %v585 = vld [vmem:[#allocation2 + $0x3] sm:$0x1]
    %s586 = sld [smem:[#allocation3 + $0x187]]
    %v587 = vstv %s586
    %v588 = vmul.f32 %v585, %v587
    %v589 = vadd.f32 %v584, %v588
    %v590 = vld [vmem:[#allocation2 + $0x4] sm:$0x1]
    %s591 = sld [smem:[#allocation3 + $0x207]]
    %v592 = vstv %s591
    %v593 = vmul.f32 %v590, %v592
    %v594 = vadd.f32 %v589, %v593
    %v595 = vld [vmem:[#allocation2 + $0x5] sm:$0x1]
    %s596 = sld [smem:[#allocation3 + $0x287]]
    %v597 = vstv %s596
    %v598 = vmul.f32 %v595, %v597
    %v599 = vadd.f32 %v594, %v598
    %v600 = vld [vmem:[#allocation2 + $0x6] sm:$0x1]
    %s601 = sld [smem:[#allocation3 + $0x307]]
    %v602 = vstv %s601
    %v603 = vmul.f32 %v600, %v602
    %v604 = vadd.f32 %v599, %v603
    %605 = vst [vmem:[#allocation6 + $0x7] sm:$0x1] %v604
    // Predicated region
    $region30: #{tpu_custom_call.1} parent=1 // pred_check
      _
    $region31: #{tpu_custom_call.1} parent=1 // pred_check_branch
      %607 = sbr.rel (0) target = $region33
    $region32: #{tpu_custom_call.1} parent=1 // pred_region
      %s609 = ssub.s32 128, 128
      %610 = vsyncadd [#allocation4], %s609
      %s612 = sshll.u32 [#allocation6], 4
      %s613 = int_to_ptr.vmem [resolvable:$true] %s612
      %615 = dma.vmem_to_hbm [thread:$0]  %s613, 128, %s6, [#allocation4]
    $region33: #{tpu_custom_call.1} parent=1 // pred_fallthru
      _
    // Predicated region
    $region34: #{tpu_custom_call.1} parent=1 // pred_check
      _
    $region35: #{tpu_custom_call.1} parent=1 // pred_check_branch
      %617 = sbr.rel (0) target = $region37
    $region36: #{tpu_custom_call.1} parent=1 // pred_region
      %618 = dma.done [#allocation4], 128
    $region37: #{tpu_custom_call.1} parent=1 // pred_fallthru
      _
    %619 = vsyncpa [#allocation4], 1
    %620 = vsyncpa [#allocation5], 1

</llo_original>
